<compile_context>
chip_gen: v7x
topology: tpu7x:2x2x1
jax: 0.10.0
libtpu: 0.0.40
codegen_flags: <defaults>
</compile_context>

<pallas_src>
import functools

import jax
import jax.numpy as jnp
from jax.experimental import pallas as pl
from jax.experimental.pallas import tpu as pltpu

EPS = 1e-5                       # nn.LayerNorm default eps
_SQRT_HALF = 0.7071067811865476  # 1/sqrt(2)


def _round_up(n, m):
    return ((n + m - 1) // m) * m


def _layernorm(h, gamma, beta):
    # Two-pass (centered) LayerNorm: numerically safe when |mu| >> sigma.
    mu = jnp.mean(h, axis=-1, keepdims=True)
    c = h - mu
    var = jnp.mean(c * c, axis=-1, keepdims=True)
    inv = jax.lax.rsqrt(var + EPS)
    return c * (inv * gamma) + beta


def _gelu(h, tanh_approx=False):
    if tanh_approx:
        # tanh goes to the EUP slot (separate VLIW slot) -> relieves VALU on the wide tensor.
        return jax.nn.gelu(h, approximate=True)
    # nn.GELU() default = exact erf-based GELU.
    return 0.5 * h * (1.0 + jax.lax.erf(h * _SQRT_HALF))


def headnet_kernel(
    gelu_tanh,                  # python bool (bound via functools.partial)
    x_ref,                      # (TB, input_dim) f32, streamed per grid step
    w_in_ref, b_in_ref,         # input_projection   (input_dim, thin) bf16 / (1, thin) f32
    g_in_ref, bt_in_ref,        # ln_input           (1, thin) f32
    ln_g_ref, ln_b_ref,         # 3 stacked block LNs (3, thin) f32
    w1_ref, b1_ref,             # bottleneck l1       (3, thin, wide) bf16 / (3, wide) f32
    w2_ref, b2_ref,             # bottleneck l2       (3, wide, thin) bf16 / (3, thin) f32
    g_out_ref, bt_out_ref,      # ln_output           (1, thin) f32
    w_out_ref, b_out_ref,       # linear_output       (thin, out_pad) bf16 / (1, out_pad) f32
    o_ref,                      # (TB, out_pad)  bf16 (or caller-chosen dtype)
):
    bf16 = jnp.bfloat16
    x = x_ref[...].astype(bf16)                                         # in-kernel cast, no wrapper copy

    # input_projection + ln_input (f32 accumulate, f32 elementwise)
    h = jnp.dot(x, w_in_ref[...], preferred_element_type=jnp.float32) + b_in_ref[...]
    h = _layernorm(h, g_in_ref[...], bt_in_ref[...])

    # 3 pre-LN bottleneck residual blocks; fori_loop bounds the (TB, wide) f32 live range.
    def block_body(i, h):
        z = _layernorm(h, ln_g_ref[pl.ds(i, 1), :], ln_b_ref[pl.ds(i, 1), :])
        z = jnp.dot(z.astype(bf16), w1_ref[i],
                    preferred_element_type=jnp.float32) + b1_ref[pl.ds(i, 1), :]
        z = _gelu(z, tanh_approx=gelu_tanh)
        z = jnp.dot(z.astype(bf16), w2_ref[i],
                    preferred_element_type=jnp.float32) + b2_ref[pl.ds(i, 1), :]
        return h + z

    h = jax.lax.fori_loop(0, 3, block_body, h)

    # ln_output + linear_output (lane-dense padded output slab, stored in bf16)
    h = _layernorm(h, g_out_ref[...], bt_out_ref[...])
    o_ref[...] = (jnp.dot(h.astype(bf16), w_out_ref[...],
                          preferred_element_type=jnp.float32)
                  + b_out_ref[...]).astype(o_ref.dtype)


def headnet_forward(x, params, *, block_batch=256, out_dtype=jnp.bfloat16, gelu_tanh=False):
    (w_in, b_in, g_in, bt_in, ln_g, ln_b, w1, b1, w2, b2,
     g_out, bt_out, w_out, b_out) = params

    batch, input_dim = x.shape
    thin = w_in.shape[1]
    wide = w1.shape[2]
    output_dim = w_out.shape[1]

    f32, bf16 = jnp.float32, jnp.bfloat16

    # ---- layout plumbing (weights only; the x activation is passed through untouched) ----
    out_pad = _round_up(max(output_dim, 128), 128)      # lane-dense output slab

    assert block_batch % 16 == 0, "block_batch must be a multiple of 16 (bf16 sublane packing)"
    # tb multiple of 16; choose it so the batch grid has >= 2 steps whenever batch allows
    # (lets dimension_semantics=("parallel",) actually shard across v7x's 2 TensorCores).
    tb = min(block_batch, max(16, _round_up((batch + 1) // 2, 16)))
    grid = (pl.cdiv(batch, tb),)                         # partial last block handled by Pallas

    # Resident weights: cast to bf16 (f32 accumulation in-kernel); pad only the output proj.
    # (In a real model these casts/pads are done once at load time, not per call.)
    w_in_b = w_in.astype(bf16)
    w1_b = w1.astype(bf16)
    w2_b = w2.astype(bf16)
    w_out_p = jnp.zeros((thin, out_pad), bf16).at[:, :output_dim].set(w_out.astype(bf16))
    b_out_p = jnp.zeros((1, out_pad), f32).at[:, :output_dim].set(b_out)

    inputs = (x, w_in_b, b_in, g_in, bt_in, ln_g, ln_b,
              w1_b, b1, w2_b, b2, g_out, bt_out, w_out_p, b_out_p)

    def resident_spec(a):
        zeros = (0,) * a.ndim
        idx = lambda b, _z=zeros: _z                     # constant index_map -> VMEM-resident
        try:
            # Single-buffer residents: constant blocks don't need double buffering.
            return pl.BlockSpec(a.shape, idx, pipeline_mode=pl.Buffered(1))
        except TypeError:
            return pl.BlockSpec(a.shape, idx)

    in_specs = [pl.BlockSpec((tb, input_dim), lambda b: (b, 0))]   # last dim == full dim (legal)
    in_specs += [resident_spec(a) for a in inputs[1:]]
    out_specs = pl.BlockSpec((tb, out_pad), lambda b: (b, 0))

    # Advisory cost estimate (erf/tanh counted as one transcendental per wide element).
    flops = 2 * batch * (input_dim * thin + 3 * 2 * thin * wide + thin * out_pad)
    transcendentals = 3 * batch * wide
    bytes_accessed = (int(x.size) * x.dtype.itemsize
                      + sum(int(a.size) * a.dtype.itemsize for a in inputs[1:])
                      + batch * out_pad * jnp.dtype(out_dtype).itemsize)

    # Per-chip VMEM budget: ~80% of physical capacity (v5e/v6e 128 MiB, v7x 64 MiB per TC).
    try:
        vmem_cap = int(pltpu.get_tpu_info().vmem_capacity_bytes)
    except Exception:
        vmem_cap = 64 * 1024 * 1024
    resident_bytes = sum(int(a.size) * a.dtype.itemsize for a in inputs[1:])   # single-buffered
    stream_bytes = 2 * tb * (input_dim * x.dtype.itemsize
                             + out_pad * jnp.dtype(out_dtype).itemsize)        # double-buffered x/o
    act_bytes = 4 * tb * (3 * thin + wide) * 4                                 # rough f32 live set
    vmem_limit = int(min(int(0.8 * vmem_cap),
                         max(32 * 1024 * 1024,
                             2 * (resident_bytes + stream_bytes + act_bytes))))

    out_p = pl.pallas_call(
        functools.partial(headnet_kernel, gelu_tanh),
        out_shape=jax.ShapeDtypeStruct((batch, out_pad), out_dtype),
        grid=grid,
        in_specs=in_specs,
        out_specs=out_specs,
        compiler_params=pltpu.CompilerParams(
            dimension_semantics=("parallel",),   # batch tiles shard across TCs on v7x
            vmem_limit_bytes=vmem_limit,
        ),
        cost_estimate=pl.CostEstimate(
            flops=int(flops),
            transcendentals=int(transcendentals),
            bytes_accessed=int(bytes_accessed),
        ),
    )(*inputs)

    return out_p[:, :output_dim]


def make_params(key, input_dim, output_dim, thin_dim, wide_dim):
    ks = jax.random.split(key, 16)
    f32 = jnp.float32

    def lin(kw, kb, din, dout):
        scale = 1.0 / jnp.sqrt(din)
        w = jax.random.uniform(kw, (din, dout), f32, -scale, scale)
        b = jax.random.uniform(kb, (1, dout), f32, -scale, scale)
        return w, b

    w_in, b_in = lin(ks[0], ks[1], input_dim, thin_dim)
    g_in = 1.0 + 0.1 * jax.random.normal(ks[2], (1, thin_dim), f32)
    bt_in = 0.1 * jax.random.normal(ks[3], (1, thin_dim), f32)

    ln_g = 1.0 + 0.1 * jax.random.normal(ks[4], (3, thin_dim), f32)
    ln_b = 0.1 * jax.random.normal(ks[5], (3, thin_dim), f32)

    w1s, b1s, w2s, b2s = [], [], [], []
    kk = jax.random.split(ks[6], 12)
    for i in range(3):
        w1, b1 = lin(kk[4 * i + 0], kk[4 * i + 1], thin_dim, wide_dim)
        w2, b2 = lin(kk[4 * i + 2], kk[4 * i + 3], wide_dim, thin_dim)
        w1s.append(w1); b1s.append(b1[0]); w2s.append(w2); b2s.append(b2[0])
    w1 = jnp.stack(w1s)          # (3, thin, wide)
    b1 = jnp.stack(b1s)          # (3, wide)
    w2 = jnp.stack(w2s)          # (3, wide, thin)
    b2 = jnp.stack(b2s)          # (3, thin)

    g_out = 1.0 + 0.1 * jax.random.normal(ks[7], (1, thin_dim), f32)
    bt_out = 0.1 * jax.random.normal(ks[8], (1, thin_dim), f32)

    w_out, b_out = lin(ks[9], ks[10], thin_dim, output_dim)

    return (w_in, b_in, g_in, bt_in, ln_g, ln_b, w1, b1, w2, b2,
            g_out, bt_out, w_out, b_out)


def headnet_reference(x, params, matmul_dtype=jnp.float32):
    """Pure-JAX reference mirroring the PyTorch forward; matmul operand dtype is selectable."""
    (w_in, b_in, g_in, bt_in, ln_g, ln_b, w1, b1, w2, b2,
     g_out, bt_out, w_out, b_out) = params

    def mm(a, w):
        return jnp.dot(a.astype(matmul_dtype), w.astype(matmul_dtype),
                       preferred_element_type=jnp.float32)

    h = mm(x, w_in) + b_in
    h = _layernorm(h, g_in, bt_in)
    for i in range(3):
        z = _layernorm(h, ln_g[i:i + 1], ln_b[i:i + 1])
        z = mm(z, w1[i]) + b1[i:i + 1]
        z = _gelu(z)
        z = mm(z, w2[i]) + b2[i:i + 1]
        h = h + z
    h = _layernorm(h, g_out, bt_out)
    return mm(h, w_out) + b_out


if __name__ == "__main__":
    # Small demo shapes (batch deliberately not a tile multiple -> exercises the partial last block).
    batch, input_dim, output_dim, thin_dim, wide_dim = 50, 16, 8, 32, 64

    key = jax.random.PRNGKey(0)
    kx, kp = jax.random.split(key)
    x = jax.random.normal(kx, (batch, input_dim), jnp.float32)
    params = make_params(kp, input_dim, output_dim, thin_dim, wide_dim)

    # block_batch=16 -> tb=16, grid=(4,): exercises the batch-tiled double-buffered pipeline.
    out = headnet_forward(x, params, block_batch=16)
    out = jax.block_until_ready(out)
    assert out.shape == (batch, output_dim)
    out_f32 = out.astype(jnp.float32)

    # Tight check vs a reference using the same bf16 MXU operands / f32 accumulation,
    # rounded to the kernel's bf16 output dtype.
    ref_bf16 = headnet_reference(x, params, matmul_dtype=jnp.bfloat16)
    ref_bf16_q = ref_bf16.astype(jnp.bfloat16).astype(jnp.float32)
    assert jnp.allclose(out_f32, ref_bf16_q, atol=2e-2, rtol=2e-2), \
        "mismatch vs bf16-matmul reference"

    # Semantic sanity check vs the exact f32 PyTorch-equivalent forward.
    ref_f32 = headnet_reference(x, params, matmul_dtype=jnp.float32)
    assert jnp.allclose(out_f32, ref_f32, atol=6e-2, rtol=6e-2), "mismatch vs f32 reference"

    print("KERNEL_OK")
</pallas_src>

<mosaic_0001>
module attributes {stable_mosaic.version = 11 : i64} {
  func.func @headnet_kernel(%arg0: i32, %arg1: memref<16x16xf32, #tpu.memory_space<vmem>>, %arg2: memref<16x32xbf16, #tpu.memory_space<vmem>>, %arg3: memref<1x32xf32, #tpu.memory_space<vmem>>, %arg4: memref<1x32xf32, #tpu.memory_space<vmem>>, %arg5: memref<1x32xf32, #tpu.memory_space<vmem>>, %arg6: memref<3x32xf32, #tpu.memory_space<vmem>>, %arg7: memref<3x32xf32, #tpu.memory_space<vmem>>, %arg8: memref<3x32x64xbf16, #tpu.memory_space<vmem>>, %arg9: memref<3x64xf32, #tpu.memory_space<vmem>>, %arg10: memref<3x64x32xbf16, #tpu.memory_space<vmem>>, %arg11: memref<3x32xf32, #tpu.memory_space<vmem>>, %arg12: memref<1x32xf32, #tpu.memory_space<vmem>>, %arg13: memref<1x32xf32, #tpu.memory_space<vmem>>, %arg14: memref<32x128xbf16, #tpu.memory_space<vmem>>, %arg15: memref<1x128xf32, #tpu.memory_space<vmem>>, %arg16: memref<16x128xbf16, #tpu.memory_space<vmem>>) attributes {dimension_semantics = [#tpu.dimension_semantics<parallel>], iteration_bounds = array<i64: 4>, scalar_prefetch = 0 : i64, scratch_operands = 0 : i64, tpu.core_type = #tpu.core_type<tc>, window_params = [{transform_indices = @transform_0, window_bounds = array<i64: 16, 16>}, {pipeline_mode = #tpu.pipeline_mode<synchronous>, transform_indices = @transform_1, window_bounds = array<i64: 16, 32>}, {pipeline_mode = #tpu.pipeline_mode<synchronous>, transform_indices = @transform_2, window_bounds = array<i64: 1, 32>}, {pipeline_mode = #tpu.pipeline_mode<synchronous>, transform_indices = @transform_3, window_bounds = array<i64: 1, 32>}, {pipeline_mode = #tpu.pipeline_mode<synchronous>, transform_indices = @transform_4, window_bounds = array<i64: 1, 32>}, {pipeline_mode = #tpu.pipeline_mode<synchronous>, transform_indices = @transform_5, window_bounds = array<i64: 3, 32>}, {pipeline_mode = #tpu.pipeline_mode<synchronous>, transform_indices = @transform_6, window_bounds = array<i64: 3, 32>}, {pipeline_mode = #tpu.pipeline_mode<synchronous>, transform_indices = @transform_7, window_bounds = array<i64: 3, 32, 64>}, {pipeline_mode = #tpu.pipeline_mode<synchronous>, transform_indices = @transform_8, window_bounds = array<i64: 3, 64>}, {pipeline_mode = #tpu.pipeline_mode<synchronous>, transform_indices = @transform_9, window_bounds = array<i64: 3, 64, 32>}, {pipeline_mode = #tpu.pipeline_mode<synchronous>, transform_indices = @transform_10, window_bounds = array<i64: 3, 32>}, {pipeline_mode = #tpu.pipeline_mode<synchronous>, transform_indices = @transform_11, window_bounds = array<i64: 1, 32>}, {pipeline_mode = #tpu.pipeline_mode<synchronous>, transform_indices = @transform_12, window_bounds = array<i64: 1, 32>}, {pipeline_mode = #tpu.pipeline_mode<synchronous>, transform_indices = @transform_13, window_bounds = array<i64: 32, 128>}, {pipeline_mode = #tpu.pipeline_mode<synchronous>, transform_indices = @transform_14, window_bounds = array<i64: 1, 128>}, {transform_indices = @transform_15, window_bounds = array<i64: 16, 128>}]} {
    %c0 = arith.constant 0 : index
    %c0_0 = arith.constant 0 : index
    %0 = vector.load %arg1[%c0, %c0_0] : memref<16x16xf32, #tpu.memory_space<vmem>>, vector<16x16xf32>
    %1 = arith.truncf %0 : vector<16x16xf32> to vector<16x16xbf16>
    %c0_1 = arith.constant 0 : index
    %c0_2 = arith.constant 0 : index
    %2 = vector.load %arg2[%c0_1, %c0_2] : memref<16x32xbf16, #tpu.memory_space<vmem>>, vector<16x32xbf16>
    %cst = arith.constant dense<0.000000e+00> : vector<16x32xf32>
    %3 = tpu.matmul %1, %2, %cst {dimension_numbers = #tpu.dot_dimension_numbers<[1], [0], [0], [1], [0, 0, 1, 1], [], []>} : vector<16x16xbf16>, vector<16x32xbf16>, vector<16x32xf32> -> vector<16x32xf32>
    %c0_3 = arith.constant 0 : index
    %c0_4 = arith.constant 0 : index
    %4 = vector.load %arg3[%c0_3, %c0_4] : memref<1x32xf32, #tpu.memory_space<vmem>>, vector<1x32xf32>
    %5 = vector.broadcast %4 : vector<1x32xf32> to vector<16x32xf32>
    %6 = arith.addf %3, %5 : vector<16x32xf32>
    %c0_5 = arith.constant 0 : index
    %c0_6 = arith.constant 0 : index
    %7 = vector.load %arg4[%c0_5, %c0_6] : memref<1x32xf32, #tpu.memory_space<vmem>>, vector<1x32xf32>
    %c0_7 = arith.constant 0 : index
    %c0_8 = arith.constant 0 : index
    %8 = vector.load %arg5[%c0_7, %c0_8] : memref<1x32xf32, #tpu.memory_space<vmem>>, vector<1x32xf32>
    %cst_9 = arith.constant dense<0.000000e+00> : vector<16xf32>
    %9 = vector.multi_reduction <add>, %6, %cst_9 [1] : vector<16x32xf32> to vector<16xf32>
    %10 = vector.shape_cast %9 : vector<16xf32> to vector<16x1xf32>
    %cst_10 = arith.constant 3.200000e+01 : f32
    %11 = vector.broadcast %cst_10 : f32 to vector<16x1xf32>
    %12 = arith.divf %10, %11 : vector<16x1xf32>
    %13 = vector.broadcast %12 : vector<16x1xf32> to vector<16x32xf32>
    %14 = arith.subf %6, %13 : vector<16x32xf32>
    %15 = arith.mulf %14, %14 : vector<16x32xf32>
    %cst_11 = arith.constant dense<0.000000e+00> : vector<16xf32>
    %16 = vector.multi_reduction <add>, %15, %cst_11 [1] : vector<16x32xf32> to vector<16xf32>
    %17 = vector.shape_cast %16 : vector<16xf32> to vector<16x1xf32>
    %cst_12 = arith.constant 3.200000e+01 : f32
    %18 = vector.broadcast %cst_12 : f32 to vector<16x1xf32>
    %19 = arith.divf %17, %18 : vector<16x1xf32>
    %cst_13 = arith.constant 9.99999974E-6 : f32
    %20 = vector.broadcast %cst_13 : f32 to vector<16x1xf32>
    %21 = arith.addf %19, %20 : vector<16x1xf32>
    %22 = math.rsqrt %21 : vector<16x1xf32>
    %23 = vector.broadcast %22 : vector<16x1xf32> to vector<16x32xf32>
    %24 = vector.broadcast %7 : vector<1x32xf32> to vector<16x32xf32>
    %25 = arith.mulf %23, %24 : vector<16x32xf32>
    %26 = arith.mulf %14, %25 : vector<16x32xf32>
    %27 = vector.broadcast %8 : vector<1x32xf32> to vector<16x32xf32>
    %28 = arith.addf %26, %27 : vector<16x32xf32>
    %c0_i32 = arith.constant 0 : i32
    %c3_i32 = arith.constant 3 : i32
    %29 = arith.addi %c0_i32, %c3_i32 : i32
    %c1_i32 = arith.constant 1 : i32
    %30 = scf.for %arg17 = %c0_i32 to %29 step %c1_i32 iter_args(%arg18 = %28) -> (vector<16x32xf32>)  : i32 {
      %61 = arith.index_cast %arg17 : i32 to index
      %c0_31 = arith.constant 0 : index
      %62 = vector.load %arg6[%61, %c0_31] : memref<3x32xf32, #tpu.memory_space<vmem>>, vector<1x32xf32>
      %63 = arith.index_cast %arg17 : i32 to index
      %c0_32 = arith.constant 0 : index
      %64 = vector.load %arg7[%63, %c0_32] : memref<3x32xf32, #tpu.memory_space<vmem>>, vector<1x32xf32>
      %cst_33 = arith.constant dense<0.000000e+00> : vector<16xf32>
      %65 = vector.multi_reduction <add>, %arg18, %cst_33 [1] : vector<16x32xf32> to vector<16xf32>
      %66 = vector.shape_cast %65 : vector<16xf32> to vector<16x1xf32>
      %cst_34 = arith.constant 3.200000e+01 : f32
      %67 = vector.broadcast %cst_34 : f32 to vector<16x1xf32>
      %68 = arith.divf %66, %67 : vector<16x1xf32>
      %69 = vector.broadcast %68 : vector<16x1xf32> to vector<16x32xf32>
      %70 = arith.subf %arg18, %69 : vector<16x32xf32>
      %71 = arith.mulf %70, %70 : vector<16x32xf32>
      %cst_35 = arith.constant dense<0.000000e+00> : vector<16xf32>
      %72 = vector.multi_reduction <add>, %71, %cst_35 [1] : vector<16x32xf32> to vector<16xf32>
      %73 = vector.shape_cast %72 : vector<16xf32> to vector<16x1xf32>
      %cst_36 = arith.constant 3.200000e+01 : f32
      %74 = vector.broadcast %cst_36 : f32 to vector<16x1xf32>
      %75 = arith.divf %73, %74 : vector<16x1xf32>
      %cst_37 = arith.constant 9.99999974E-6 : f32
      %76 = vector.broadcast %cst_37 : f32 to vector<16x1xf32>
      %77 = arith.addf %75, %76 : vector<16x1xf32>
      %78 = math.rsqrt %77 : vector<16x1xf32>
      %79 = vector.broadcast %78 : vector<16x1xf32> to vector<16x32xf32>
      %80 = vector.broadcast %62 : vector<1x32xf32> to vector<16x32xf32>
      %81 = arith.mulf %79, %80 : vector<16x32xf32>
      %82 = arith.mulf %70, %81 : vector<16x32xf32>
      %83 = vector.broadcast %64 : vector<1x32xf32> to vector<16x32xf32>
      %84 = arith.addf %82, %83 : vector<16x32xf32>
      %85 = arith.truncf %84 : vector<16x32xf32> to vector<16x32xbf16>
      %86 = arith.index_cast %arg17 : i32 to index
      %c0_38 = arith.constant 0 : index
      %c0_39 = arith.constant 0 : index
      %87 = vector.load %arg8[%86, %c0_38, %c0_39] : memref<3x32x64xbf16, #tpu.memory_space<vmem>>, vector<1x32x64xbf16>
      %88 = vector.shape_cast %87 : vector<1x32x64xbf16> to vector<32x64xbf16>
      %cst_40 = arith.constant dense<0.000000e+00> : vector<16x64xf32>
      %89 = tpu.matmul %85, %88, %cst_40 {dimension_numbers = #tpu.dot_dimension_numbers<[1], [0], [0], [1], [0, 0, 1, 1], [], []>} : vector<16x32xbf16>, vector<32x64xbf16>, vector<16x64xf32> -> vector<16x64xf32>
      %90 = arith.index_cast %arg17 : i32 to index
      %c0_41 = arith.constant 0 : index
      %91 = vector.load %arg9[%90, %c0_41] : memref<3x64xf32, #tpu.memory_space<vmem>>, vector<1x64xf32>
      %92 = vector.broadcast %91 : vector<1x64xf32> to vector<16x64xf32>
      %93 = arith.addf %89, %92 : vector<16x64xf32>
      %cst_42 = arith.constant 5.000000e-01 : f32
      %94 = vector.broadcast %cst_42 : f32 to vector<16x64xf32>
      %95 = arith.mulf %94, %93 : vector<16x64xf32>
      %cst_43 = arith.constant 0.707106769 : f32
      %96 = vector.broadcast %cst_43 : f32 to vector<16x64xf32>
      %97 = arith.mulf %93, %96 : vector<16x64xf32>
      %98 = math.erf %97 : vector<16x64xf32>
      %cst_44 = arith.constant 1.000000e+00 : f32
      %99 = vector.broadcast %cst_44 : f32 to vector<16x64xf32>
      %100 = arith.addf %99, %98 : vector<16x64xf32>
      %101 = arith.mulf %95, %100 : vector<16x64xf32>
      %102 = arith.truncf %101 : vector<16x64xf32> to vector<16x64xbf16>
      %103 = arith.index_cast %arg17 : i32 to index
      %c0_45 = arith.constant 0 : index
      %c0_46 = arith.constant 0 : index
      %104 = vector.load %arg10[%103, %c0_45, %c0_46] : memref<3x64x32xbf16, #tpu.memory_space<vmem>>, vector<1x64x32xbf16>
      %105 = vector.shape_cast %104 : vector<1x64x32xbf16> to vector<64x32xbf16>
      %cst_47 = arith.constant dense<0.000000e+00> : vector<16x32xf32>
      %106 = tpu.matmul %102, %105, %cst_47 {dimension_numbers = #tpu.dot_dimension_numbers<[1], [0], [0], [1], [0, 0, 1, 1], [], []>} : vector<16x64xbf16>, vector<64x32xbf16>, vector<16x32xf32> -> vector<16x32xf32>
      %107 = arith.index_cast %arg17 : i32 to index
      %c0_48 = arith.constant 0 : index
      %108 = vector.load %arg11[%107, %c0_48] : memref<3x32xf32, #tpu.memory_space<vmem>>, vector<1x32xf32>
      %109 = vector.broadcast %108 : vector<1x32xf32> to vector<16x32xf32>
      %110 = arith.addf %106, %109 : vector<16x32xf32>
      %111 = arith.addf %arg18, %110 : vector<16x32xf32>
      scf.yield %111 : vector<16x32xf32>
    }
    %c3_i32_14 = arith.constant 3 : i32
    %c0_15 = arith.constant 0 : index
    %c0_16 = arith.constant 0 : index
    %31 = vector.load %arg12[%c0_15, %c0_16] : memref<1x32xf32, #tpu.memory_space<vmem>>, vector<1x32xf32>
    %c0_17 = arith.constant 0 : index
    %c0_18 = arith.constant 0 : index
    %32 = vector.load %arg13[%c0_17, %c0_18] : memref<1x32xf32, #tpu.memory_space<vmem>>, vector<1x32xf32>
    %cst_19 = arith.constant dense<0.000000e+00> : vector<16xf32>
    %33 = vector.multi_reduction <add>, %30, %cst_19 [1] : vector<16x32xf32> to vector<16xf32>
    %34 = vector.shape_cast %33 : vector<16xf32> to vector<16x1xf32>
    %cst_20 = arith.constant 3.200000e+01 : f32
    %35 = vector.broadcast %cst_20 : f32 to vector<16x1xf32>
    %36 = arith.divf %34, %35 : vector<16x1xf32>
    %37 = vector.broadcast %36 : vector<16x1xf32> to vector<16x32xf32>
    %38 = arith.subf %30, %37 : vector<16x32xf32>
    %39 = arith.mulf %38, %38 : vector<16x32xf32>
    %cst_21 = arith.constant dense<0.000000e+00> : vector<16xf32>
    %40 = vector.multi_reduction <add>, %39, %cst_21 [1] : vector<16x32xf32> to vector<16xf32>
    %41 = vector.shape_cast %40 : vector<16xf32> to vector<16x1xf32>
    %cst_22 = arith.constant 3.200000e+01 : f32
    %42 = vector.broadcast %cst_22 : f32 to vector<16x1xf32>
    %43 = arith.divf %41, %42 : vector<16x1xf32>
    %cst_23 = arith.constant 9.99999974E-6 : f32
    %44 = vector.broadcast %cst_23 : f32 to vector<16x1xf32>
    %45 = arith.addf %43, %44 : vector<16x1xf32>
    %46 = math.rsqrt %45 : vector<16x1xf32>
    %47 = vector.broadcast %46 : vector<16x1xf32> to vector<16x32xf32>
    %48 = vector.broadcast %31 : vector<1x32xf32> to vector<16x32xf32>
    %49 = arith.mulf %47, %48 : vector<16x32xf32>
    %50 = arith.mulf %38, %49 : vector<16x32xf32>
    %51 = vector.broadcast %32 : vector<1x32xf32> to vector<16x32xf32>
    %52 = arith.addf %50, %51 : vector<16x32xf32>
    %53 = arith.truncf %52 : vector<16x32xf32> to vector<16x32xbf16>
    %c0_24 = arith.constant 0 : index
    %c0_25 = arith.constant 0 : index
    %54 = vector.load %arg14[%c0_24, %c0_25] : memref<32x128xbf16, #tpu.memory_space<vmem>>, vector<32x128xbf16>
    %cst_26 = arith.constant dense<0.000000e+00> : vector<16x128xf32>
    %55 = tpu.matmul %53, %54, %cst_26 {dimension_numbers = #tpu.dot_dimension_numbers<[1], [0], [0], [1], [0, 0, 1, 1], [], []>} : vector<16x32xbf16>, vector<32x128xbf16>, vector<16x128xf32> -> vector<16x128xf32>
    %c0_27 = arith.constant 0 : index
    %c0_28 = arith.constant 0 : index
    %56 = vector.load %arg15[%c0_27, %c0_28] : memref<1x128xf32, #tpu.memory_space<vmem>>, vector<1x128xf32>
    %57 = vector.broadcast %56 : vector<1x128xf32> to vector<16x128xf32>
    %58 = arith.addf %55, %57 : vector<16x128xf32>
    %59 = arith.truncf %58 : vector<16x128xf32> to vector<16x128xbf16>
    %c0_29 = arith.constant 0 : index
    %c0_30 = arith.constant 0 : index
    %60 = vector.load %arg16[%c0_29, %c0_30] : memref<16x128xbf16, #tpu.memory_space<vmem>>, vector<16x128xbf16>
    tpu.vector_store %arg16[%c0_29, %c0_30], %59 {strides = array<i32>} : memref<16x128xbf16, #tpu.memory_space<vmem>>, vector<16x128xbf16>,
    return
  }
  func.func @transform_0(%arg0: i32) -> (i32, i32) {
    %c0_i32 = arith.constant 0 : i32
    %c0_i32_0 = arith.constant 0 : i32
    return %arg0, %c0_i32 : i32, i32
  }
  func.func @transform_1(%arg0: i32) -> (i32, i32) {
    %c0_i32 = arith.constant 0 : i32
    %c0_i32_0 = arith.constant 0 : i32
    %c0_i32_1 = arith.constant 0 : i32
    return %c0_i32, %c0_i32_0 : i32, i32
  }
  func.func @transform_2(%arg0: i32) -> (i32, i32) {
    %c0_i32 = arith.constant 0 : i32
    %c0_i32_0 = arith.constant 0 : i32
    %c0_i32_1 = arith.constant 0 : i32
    return %c0_i32, %c0_i32_0 : i32, i32
  }
  func.func @transform_3(%arg0: i32) -> (i32, i32) {
    %c0_i32 = arith.constant 0 : i32
    %c0_i32_0 = arith.constant 0 : i32
    %c0_i32_1 = arith.constant 0 : i32
    return %c0_i32, %c0_i32_0 : i32, i32
  }
  func.func @transform_4(%arg0: i32) -> (i32, i32) {
    %c0_i32 = arith.constant 0 : i32
    %c0_i32_0 = arith.constant 0 : i32
    %c0_i32_1 = arith.constant 0 : i32
    return %c0_i32, %c0_i32_0 : i32, i32
  }
  func.func @transform_5(%arg0: i32) -> (i32, i32) {
    %c0_i32 = arith.constant 0 : i32
    %c0_i32_0 = arith.constant 0 : i32
    %c0_i32_1 = arith.constant 0 : i32
    return %c0_i32, %c0_i32_0 : i32, i32
  }
  func.func @transform_6(%arg0: i32) -> (i32, i32) {
    %c0_i32 = arith.constant 0 : i32
    %c0_i32_0 = arith.constant 0 : i32
    %c0_i32_1 = arith.constant 0 : i32
    return %c0_i32, %c0_i32_0 : i32, i32
  }
  func.func @transform_7(%arg0: i32) -> (i32, i32, i32) {
    %c0_i32 = arith.constant 0 : i32
    %c0_i32_0 = arith.constant 0 : i32
    %c0_i32_1 = arith.constant 0 : i32
    %c0_i32_2 = arith.constant 0 : i32
    return %c0_i32, %c0_i32_0, %c0_i32_1 : i32, i32, i32
  }
  func.func @transform_8(%arg0: i32) -> (i32, i32) {
    %c0_i32 = arith.constant 0 : i32
    %c0_i32_0 = arith.constant 0 : i32
    %c0_i32_1 = arith.constant 0 : i32
    return %c0_i32, %c0_i32_0 : i32, i32
  }
  func.func @transform_9(%arg0: i32) -> (i32, i32, i32) {
    %c0_i32 = arith.constant 0 : i32
    %c0_i32_0 = arith.constant 0 : i32
    %c0_i32_1 = arith.constant 0 : i32
    %c0_i32_2 = arith.constant 0 : i32
    return %c0_i32, %c0_i32_0, %c0_i32_1 : i32, i32, i32
  }
  func.func @transform_10(%arg0: i32) -> (i32, i32) {
    %c0_i32 = arith.constant 0 : i32
    %c0_i32_0 = arith.constant 0 : i32
    %c0_i32_1 = arith.constant 0 : i32
    return %c0_i32, %c0_i32_0 : i32, i32
  }
  func.func @transform_11(%arg0: i32) -> (i32, i32) {
    %c0_i32 = arith.constant 0 : i32
    %c0_i32_0 = arith.constant 0 : i32
    %c0_i32_1 = arith.constant 0 : i32
    return %c0_i32, %c0_i32_0 : i32, i32
  }
  func.func @transform_12(%arg0: i32) -> (i32, i32) {
    %c0_i32 = arith.constant 0 : i32
    %c0_i32_0 = arith.constant 0 : i32
    %c0_i32_1 = arith.constant 0 : i32
    return %c0_i32, %c0_i32_0 : i32, i32
  }
  func.func @transform_13(%arg0: i32) -> (i32, i32) {
    %c0_i32 = arith.constant 0 : i32
    %c0_i32_0 = arith.constant 0 : i32
    %c0_i32_1 = arith.constant 0 : i32
    return %c0_i32, %c0_i32_0 : i32, i32
  }
  func.func @transform_14(%arg0: i32) -> (i32, i32) {
    %c0_i32 = arith.constant 0 : i32
    %c0_i32_0 = arith.constant 0 : i32
    %c0_i32_1 = arith.constant 0 : i32
    return %c0_i32, %c0_i32_0 : i32, i32
  }
  func.func @transform_15(%arg0: i32) -> (i32, i32) {
    %c0_i32 = arith.constant 0 : i32
    %c0_i32_0 = arith.constant 0 : i32
    return %arg0, %c0_i32 : i32, i32
  }
}

</mosaic_0001>

<llo_original>
// kernel: tpu_custom_call.1
$region0: #{tpu_custom_call.1}
  #allocation0 [shape = 'u32[]', space=smem, size = 0x4, offset = 0x4, fixed_abs, tag = 'smem constant byte address 0x4 - core index']
  #allocation1 [shape = 'u32[144,128]{1,0:T(1,128)}', space=vmem, size = 0x12000, scoped, tag = 'internal scratch']
  %s0 = inlined_call_operand.vmem [shape: f32[50,16], index: 0, kind: input, shape index: {}]
  %s1 = inlined_call_operand.vmem [shape: bf16[16,32], index: 1, kind: input, shape index: {}]
  %s2 = inlined_call_operand.vmem [shape: f32[1,32], index: 2, kind: input, shape index: {}]
  %s3 = inlined_call_operand.vmem [shape: f32[1,32], index: 3, kind: input, shape index: {}]
  %s4 = inlined_call_operand.vmem [shape: f32[1,32], index: 4, kind: input, shape index: {}]
  %s5 = inlined_call_operand.vmem [shape: f32[3,32], index: 5, kind: input, shape index: {}]
  %s6 = inlined_call_operand.vmem [shape: f32[3,32], index: 6, kind: input, shape index: {}]
  %s7 = inlined_call_operand.vmem [shape: bf16[3,32,64], index: 7, kind: input, shape index: {}]
  %s8 = inlined_call_operand.vmem [shape: f32[3,64], index: 8, kind: input, shape index: {}]
  %s9 = inlined_call_operand.vmem [shape: bf16[3,64,32], index: 9, kind: input, shape index: {}]
  %s10 = inlined_call_operand.vmem [shape: f32[3,32], index: 10, kind: input, shape index: {}]
  %s11 = inlined_call_operand.vmem [shape: f32[1,32], index: 11, kind: input, shape index: {}]
  %s12 = inlined_call_operand.vmem [shape: f32[1,32], index: 12, kind: input, shape index: {}]
  %s13 = inlined_call_operand.vmem [shape: bf16[32,128], index: 13, kind: input, shape index: {}]
  %s14 = inlined_call_operand.vmem [shape: f32[1,128], index: 14, kind: input, shape index: {}]
  %s15 = inlined_call_operand.hbm [shape: bf16[50,128], index: 15, kind: output, shape index: {}]
  %s16 = sld [smem:[#allocation0]]
  $region100: #{tpu_custom_call.1} parent=0
    _
  %s18 = ssub.s32 1, %s16
  %s19 = scalar_select 0, %s18, %s16
  $region1: #{tpu_custom_call.1} parent=0
    #allocation2 [shape = 'u8[8192]{0}', space=vmem, size = 0x2000, scoped, tag = 'output window, operand 0']
    #allocation3 [shape = 's32[2]{0}', space=sflag, size = 0x8, scoped, tag = 'scoped memory for tpu_custom_call.1']
    %20 = vsyncpa [#allocation3], 0
    %s21 = scalar_lea.sflag [#allocation3], 1
    %22 = vsyncpa %s21, 0
    loop: start=0, step=1, limit=6
    $region2: #{tpu_custom_call.1} parent=1 // loop_pre_header
      _
    $region3: #{tpu_custom_call.1} parent=1 // loop_header
      %s24 = sphi 0, %s28
      %p25 = scmp.ge.s32.totalorder %s24, 6
      %s34 = sphi 0, %s36
      %s37 = sphi 0, %s34
      %s38 = sphi 0, %s37
      %s54 = sphi 0, %s38
      %s58 = sphi 0, %s58
      %s60 = sphi 0, %s58
      %s61 = sphi 0, %s60
      %s75 = sphi 0, %s61
      %s79 = sphi 0, %s79
      %s81 = sphi 0, %s79
      %s82 = sphi 0, %s81
      %s96 = sphi 0, %s82
      %s100 = sphi 0, %s100
      %s102 = sphi 0, %s100
      %s103 = sphi 0, %s102
      %s117 = sphi 0, %s103
      %s121 = sphi 0, %s121
      %s123 = sphi 0, %s121
      %s124 = sphi 0, %s123
      %s138 = sphi 0, %s124
      %s142 = sphi 0, %s142
      %s144 = sphi 0, %s142
      %s145 = sphi 0, %s144
      %s159 = sphi 0, %s145
      %s163 = sphi 0, %s163
      %s165 = sphi 0, %s163
      %s166 = sphi 0, %s165
      %s180 = sphi 0, %s166
      %s184 = sphi 0, %s184
      %s186 = sphi 0, %s184
      %s187 = sphi 0, %s186
      %s201 = sphi 0, %s187
      %s205 = sphi 0, %s205
      %s207 = sphi 0, %s205
      %s208 = sphi 0, %s207
      %s222 = sphi 0, %s208
      %s226 = sphi 0, %s226
      %s228 = sphi 0, %s226
      %s229 = sphi 0, %s228
      %s243 = sphi 0, %s229
      %s247 = sphi 0, %s247
      %s249 = sphi 0, %s247
      %s250 = sphi 0, %s249
      %s264 = sphi 0, %s250
      %s268 = sphi 0, %s268
      %s270 = sphi 0, %s268
      %s271 = sphi 0, %s270
      %s285 = sphi 0, %s271
      %s289 = sphi 0, %s289
      %s291 = sphi 0, %s289
      %s292 = sphi 0, %s291
      %s306 = sphi 0, %s292
      %s310 = sphi 0, %s310
      %s312 = sphi 0, %s310
      %s313 = sphi 0, %s312
      %s327 = sphi 0, %s313
      %s331 = sphi 0, %s331
      %s333 = sphi 0, %s331
      %s334 = sphi 0, %s333
      %s348 = sphi 0, %s334
      %s354 = sphi 0, %s356
      %s357 = sphi 0, %s354
      %s358 = sphi 0, %s357
      %s374 = sphi 0, %s358
    $region4: #{tpu_custom_call.1} parent=1 // loop_header_branch
      %27 = sbr.rel (%p25) target = $region8
    $region5: #{tpu_custom_call.1} parent=1 // loop_body
      %s29 = ssub.s32 %s24, 1
      %s30 = ssub.s32 %s24, 2
      %s31 = sadd.s32 %s24, 1
      %s32 = ssub.s32 %s24, %s31
      %p33 = scmp.eq.s32.totalorder %s32, 0
      %s35 = sadd.s32 %s34, 1
      %s36 = scalar_select %p33, %s34, %s35
      %p39 = pneg %p33
      %p40 = scmp.eq.s32.totalorder %s24, 3
      %p41 = por %p39, %p40
      %p42 = scmp.ne.s32.totalorder %s34, %s37
      %p43 = scmp.eq.s32.totalorder %s24, 0
      %p44 = por %p42, %p43
      %p45 = scmp.ne.s32.totalorder %s34, %s37
      %p46 = scmp.eq.s32.totalorder %s29, 3
      %p47 = por %p45, %p46
      %p48 = scmp.ne.s32.totalorder %s37, %s38
      %p49 = scmp.eq.s32.totalorder %s29, 0
      %p50 = por %p48, %p49
      %p51 = scmp.ne.s32.totalorder %s37, %s38
      %p52 = scmp.eq.s32.totalorder %s30, 3
      %p53 = por %p51, %p52
      %p55 = scmp.ne.s32.totalorder %s38, %s54
      %p56 = scmp.eq.s32.totalorder %s30, 0
      %p57 = por %p55, %p56
      %s59 = sadd.s32 %s58, 1
      %p62 = scmp.eq.s32.totalorder %s24, 3
      %p63 = scmp.ne.s32.totalorder %s58, %s60
      %p64 = scmp.eq.s32.totalorder %s24, 0
      %p65 = por %p63, %p64
      %p66 = scmp.ne.s32.totalorder %s58, %s60
      %p67 = scmp.eq.s32.totalorder %s29, 3
      %p68 = por %p66, %p67
      %p69 = scmp.ne.s32.totalorder %s60, %s61
      %p70 = scmp.eq.s32.totalorder %s29, 0
      %p71 = por %p69, %p70
      %p72 = scmp.ne.s32.totalorder %s60, %s61
      %p73 = scmp.eq.s32.totalorder %s30, 3
      %p74 = por %p72, %p73
      %p76 = scmp.ne.s32.totalorder %s61, %s75
      %p77 = scmp.eq.s32.totalorder %s30, 0
      %p78 = por %p76, %p77
      %s80 = sadd.s32 %s79, 1
      %p83 = scmp.eq.s32.totalorder %s24, 3
      %p84 = scmp.ne.s32.totalorder %s79, %s81
      %p85 = scmp.eq.s32.totalorder %s24, 0
      %p86 = por %p84, %p85
      %p87 = scmp.ne.s32.totalorder %s79, %s81
      %p88 = scmp.eq.s32.totalorder %s29, 3
      %p89 = por %p87, %p88
      %p90 = scmp.ne.s32.totalorder %s81, %s82
      %p91 = scmp.eq.s32.totalorder %s29, 0
      %p92 = por %p90, %p91
      %p93 = scmp.ne.s32.totalorder %s81, %s82
      %p94 = scmp.eq.s32.totalorder %s30, 3
      %p95 = por %p93, %p94
      %p97 = scmp.ne.s32.totalorder %s82, %s96
      %p98 = scmp.eq.s32.totalorder %s30, 0
      %p99 = por %p97, %p98
      %s101 = sadd.s32 %s100, 1
      %p104 = scmp.eq.s32.totalorder %s24, 3
      %p105 = scmp.ne.s32.totalorder %s100, %s102
      %p106 = scmp.eq.s32.totalorder %s24, 0
      %p107 = por %p105, %p106
      %p108 = scmp.ne.s32.totalorder %s100, %s102
      %p109 = scmp.eq.s32.totalorder %s29, 3
      %p110 = por %p108, %p109
      %p111 = scmp.ne.s32.totalorder %s102, %s103
      %p112 = scmp.eq.s32.totalorder %s29, 0
      %p113 = por %p111, %p112
      %p114 = scmp.ne.s32.totalorder %s102, %s103
      %p115 = scmp.eq.s32.totalorder %s30, 3
      %p116 = por %p114, %p115
      %p118 = scmp.ne.s32.totalorder %s103, %s117
      %p119 = scmp.eq.s32.totalorder %s30, 0
      %p120 = por %p118, %p119
      %s122 = sadd.s32 %s121, 1
      %p125 = scmp.eq.s32.totalorder %s24, 3
      %p126 = scmp.ne.s32.totalorder %s121, %s123
      %p127 = scmp.eq.s32.totalorder %s24, 0
      %p128 = por %p126, %p127
      %p129 = scmp.ne.s32.totalorder %s121, %s123
      %p130 = scmp.eq.s32.totalorder %s29, 3
      %p131 = por %p129, %p130
      %p132 = scmp.ne.s32.totalorder %s123, %s124
      %p133 = scmp.eq.s32.totalorder %s29, 0
      %p134 = por %p132, %p133
      %p135 = scmp.ne.s32.totalorder %s123, %s124
      %p136 = scmp.eq.s32.totalorder %s30, 3
      %p137 = por %p135, %p136
      %p139 = scmp.ne.s32.totalorder %s124, %s138
      %p140 = scmp.eq.s32.totalorder %s30, 0
      %p141 = por %p139, %p140
      %s143 = sadd.s32 %s142, 1
      %p146 = scmp.eq.s32.totalorder %s24, 3
      %p147 = scmp.ne.s32.totalorder %s142, %s144
      %p148 = scmp.eq.s32.totalorder %s24, 0
      %p149 = por %p147, %p148
      %p150 = scmp.ne.s32.totalorder %s142, %s144
      %p151 = scmp.eq.s32.totalorder %s29, 3
      %p152 = por %p150, %p151
      %p153 = scmp.ne.s32.totalorder %s144, %s145
      %p154 = scmp.eq.s32.totalorder %s29, 0
      %p155 = por %p153, %p154
      %p156 = scmp.ne.s32.totalorder %s144, %s145
      %p157 = scmp.eq.s32.totalorder %s30, 3
      %p158 = por %p156, %p157
      %p160 = scmp.ne.s32.totalorder %s145, %s159
      %p161 = scmp.eq.s32.totalorder %s30, 0
      %p162 = por %p160, %p161
      %s164 = sadd.s32 %s163, 1
      %p167 = scmp.eq.s32.totalorder %s24, 3
      %p168 = scmp.ne.s32.totalorder %s163, %s165
      %p169 = scmp.eq.s32.totalorder %s24, 0
      %p170 = por %p168, %p169
      %p171 = scmp.ne.s32.totalorder %s163, %s165
      %p172 = scmp.eq.s32.totalorder %s29, 3
      %p173 = por %p171, %p172
      %p174 = scmp.ne.s32.totalorder %s165, %s166
      %p175 = scmp.eq.s32.totalorder %s29, 0
      %p176 = por %p174, %p175
      %p177 = scmp.ne.s32.totalorder %s165, %s166
      %p178 = scmp.eq.s32.totalorder %s30, 3
      %p179 = por %p177, %p178
      %p181 = scmp.ne.s32.totalorder %s166, %s180
      %p182 = scmp.eq.s32.totalorder %s30, 0
      %p183 = por %p181, %p182
      %s185 = sadd.s32 %s184, 1
      %p188 = scmp.eq.s32.totalorder %s24, 3
      %p189 = scmp.ne.s32.totalorder %s184, %s186
      %p190 = scmp.eq.s32.totalorder %s24, 0
      %p191 = por %p189, %p190
      %p192 = scmp.ne.s32.totalorder %s184, %s186
      %p193 = scmp.eq.s32.totalorder %s29, 3
      %p194 = por %p192, %p193
      %p195 = scmp.ne.s32.totalorder %s186, %s187
      %p196 = scmp.eq.s32.totalorder %s29, 0
      %p197 = por %p195, %p196
      %p198 = scmp.ne.s32.totalorder %s186, %s187
      %p199 = scmp.eq.s32.totalorder %s30, 3
      %p200 = por %p198, %p199
      %p202 = scmp.ne.s32.totalorder %s187, %s201
      %p203 = scmp.eq.s32.totalorder %s30, 0
      %p204 = por %p202, %p203
      %s206 = sadd.s32 %s205, 1
      %p209 = scmp.eq.s32.totalorder %s24, 3
      %p210 = scmp.ne.s32.totalorder %s205, %s207
      %p211 = scmp.eq.s32.totalorder %s24, 0
      %p212 = por %p210, %p211
      %p213 = scmp.ne.s32.totalorder %s205, %s207
      %p214 = scmp.eq.s32.totalorder %s29, 3
      %p215 = por %p213, %p214
      %p216 = scmp.ne.s32.totalorder %s207, %s208
      %p217 = scmp.eq.s32.totalorder %s29, 0
      %p218 = por %p216, %p217
      %p219 = scmp.ne.s32.totalorder %s207, %s208
      %p220 = scmp.eq.s32.totalorder %s30, 3
      %p221 = por %p219, %p220
      %p223 = scmp.ne.s32.totalorder %s208, %s222
      %p224 = scmp.eq.s32.totalorder %s30, 0
      %p225 = por %p223, %p224
      %s227 = sadd.s32 %s226, 1
      %p230 = scmp.eq.s32.totalorder %s24, 3
      %p231 = scmp.ne.s32.totalorder %s226, %s228
      %p232 = scmp.eq.s32.totalorder %s24, 0
      %p233 = por %p231, %p232
      %p234 = scmp.ne.s32.totalorder %s226, %s228
      %p235 = scmp.eq.s32.totalorder %s29, 3
      %p236 = por %p234, %p235
      %p237 = scmp.ne.s32.totalorder %s228, %s229
      %p238 = scmp.eq.s32.totalorder %s29, 0
      %p239 = por %p237, %p238
      %p240 = scmp.ne.s32.totalorder %s228, %s229
      %p241 = scmp.eq.s32.totalorder %s30, 3
      %p242 = por %p240, %p241
      %p244 = scmp.ne.s32.totalorder %s229, %s243
      %p245 = scmp.eq.s32.totalorder %s30, 0
      %p246 = por %p244, %p245
      %s248 = sadd.s32 %s247, 1
      %p251 = scmp.eq.s32.totalorder %s24, 3
      %p252 = scmp.ne.s32.totalorder %s247, %s249
      %p253 = scmp.eq.s32.totalorder %s24, 0
      %p254 = por %p252, %p253
      %p255 = scmp.ne.s32.totalorder %s247, %s249
      %p256 = scmp.eq.s32.totalorder %s29, 3
      %p257 = por %p255, %p256
      %p258 = scmp.ne.s32.totalorder %s249, %s250
      %p259 = scmp.eq.s32.totalorder %s29, 0
      %p260 = por %p258, %p259
      %p261 = scmp.ne.s32.totalorder %s249, %s250
      %p262 = scmp.eq.s32.totalorder %s30, 3
      %p263 = por %p261, %p262
      %p265 = scmp.ne.s32.totalorder %s250, %s264
      %p266 = scmp.eq.s32.totalorder %s30, 0
      %p267 = por %p265, %p266
      %s269 = sadd.s32 %s268, 1
      %p272 = scmp.eq.s32.totalorder %s24, 3
      %p273 = scmp.ne.s32.totalorder %s268, %s270
      %p274 = scmp.eq.s32.totalorder %s24, 0
      %p275 = por %p273, %p274
      %p276 = scmp.ne.s32.totalorder %s268, %s270
      %p277 = scmp.eq.s32.totalorder %s29, 3
      %p278 = por %p276, %p277
      %p279 = scmp.ne.s32.totalorder %s270, %s271
      %p280 = scmp.eq.s32.totalorder %s29, 0
      %p281 = por %p279, %p280
      %p282 = scmp.ne.s32.totalorder %s270, %s271
      %p283 = scmp.eq.s32.totalorder %s30, 3
      %p284 = por %p282, %p283
      %p286 = scmp.ne.s32.totalorder %s271, %s285
      %p287 = scmp.eq.s32.totalorder %s30, 0
      %p288 = por %p286, %p287
      %s290 = sadd.s32 %s289, 1
      %p293 = scmp.eq.s32.totalorder %s24, 3
      %p294 = scmp.ne.s32.totalorder %s289, %s291
      %p295 = scmp.eq.s32.totalorder %s24, 0
      %p296 = por %p294, %p295
      %p297 = scmp.ne.s32.totalorder %s289, %s291
      %p298 = scmp.eq.s32.totalorder %s29, 3
      %p299 = por %p297, %p298
      %p300 = scmp.ne.s32.totalorder %s291, %s292
      %p301 = scmp.eq.s32.totalorder %s29, 0
      %p302 = por %p300, %p301
      %p303 = scmp.ne.s32.totalorder %s291, %s292
      %p304 = scmp.eq.s32.totalorder %s30, 3
      %p305 = por %p303, %p304
      %p307 = scmp.ne.s32.totalorder %s292, %s306
      %p308 = scmp.eq.s32.totalorder %s30, 0
      %p309 = por %p307, %p308
      %s311 = sadd.s32 %s310, 1
      %p314 = scmp.eq.s32.totalorder %s24, 3
      %p315 = scmp.ne.s32.totalorder %s310, %s312
      %p316 = scmp.eq.s32.totalorder %s24, 0
      %p317 = por %p315, %p316
      %p318 = scmp.ne.s32.totalorder %s310, %s312
      %p319 = scmp.eq.s32.totalorder %s29, 3
      %p320 = por %p318, %p319
      %p321 = scmp.ne.s32.totalorder %s312, %s313
      %p322 = scmp.eq.s32.totalorder %s29, 0
      %p323 = por %p321, %p322
      %p324 = scmp.ne.s32.totalorder %s312, %s313
      %p325 = scmp.eq.s32.totalorder %s30, 3
      %p326 = por %p324, %p325
      %p328 = scmp.ne.s32.totalorder %s313, %s327
      %p329 = scmp.eq.s32.totalorder %s30, 0
      %p330 = por %p328, %p329
      %s332 = sadd.s32 %s331, 1
      %p335 = scmp.eq.s32.totalorder %s24, 3
      %p336 = scmp.ne.s32.totalorder %s331, %s333
      %p337 = scmp.eq.s32.totalorder %s24, 0
      %p338 = por %p336, %p337
      %p339 = scmp.ne.s32.totalorder %s331, %s333
      %p340 = scmp.eq.s32.totalorder %s29, 3
      %p341 = por %p339, %p340
      %p342 = scmp.ne.s32.totalorder %s333, %s334
      %p343 = scmp.eq.s32.totalorder %s29, 0
      %p344 = por %p342, %p343
      %p345 = scmp.ne.s32.totalorder %s333, %s334
      %p346 = scmp.eq.s32.totalorder %s30, 3
      %p347 = por %p345, %p346
      %p349 = scmp.ne.s32.totalorder %s334, %s348
      %p350 = scmp.eq.s32.totalorder %s30, 0
      %p351 = por %p349, %p350
      %s352 = ssub.s32 %s24, %s31
      %p353 = scmp.eq.s32.totalorder %s352, 0
      %s355 = sadd.s32 %s354, 1
      %s356 = scalar_select %p353, %s354, %s355
      %p359 = pneg %p353
      %p360 = scmp.eq.s32.totalorder %s24, 3
      %p361 = por %p359, %p360
      %p362 = scmp.ne.s32.totalorder %s354, %s357
      %p363 = scmp.eq.s32.totalorder %s24, 0
      %p364 = por %p362, %p363
      %p365 = scmp.ne.s32.totalorder %s354, %s357
      %p366 = scmp.eq.s32.totalorder %s29, 3
      %p367 = por %p365, %p366
      %p368 = scmp.ne.s32.totalorder %s357, %s358
      %p369 = scmp.eq.s32.totalorder %s29, 0
      %p370 = por %p368, %p369
      %p371 = scmp.ne.s32.totalorder %s357, %s358
      %p372 = scmp.eq.s32.totalorder %s30, 3
      %p373 = por %p371, %p372
      %p375 = scmp.ne.s32.totalorder %s358, %s374
      %p376 = scmp.eq.s32.totalorder %s30, 0
      %p377 = por %p375, %p376
      %p378 = scmp.le.s32.totalorder 1, %s24
      %p379 = scmp.lt.s32.totalorder %s24, 5
      %p380 = pnand %p378, %p379
      %p381 = pneg %p380
      // Predicated region
      $region9: #{tpu_custom_call.1} parent=5 // pred_check
        _
      $region10: #{tpu_custom_call.1} parent=5 // pred_check_branch
        %383 = sbr.rel (%p380) target = $region12
      $region11: #{tpu_custom_call.1} parent=5 // pred_region
        %s384 = ssub.s32 %s24, 1
        // Predicated region
        $region13: #{tpu_custom_call.1} parent=11 // pred_check
          %p385 = pneg %p71
        $region14: #{tpu_custom_call.1} parent=11 // pred_check_branch
          %387 = sbr.rel (%p385) target = $region16
        $region15: #{tpu_custom_call.1} parent=11 // pred_region
          _
        $region16: #{tpu_custom_call.1} parent=11 // pred_fallthru
          _
        // Predicated region
        $region17: #{tpu_custom_call.1} parent=11 // pred_check
          %p388 = pneg %p92
        $region18: #{tpu_custom_call.1} parent=11 // pred_check_branch
          %390 = sbr.rel (%p388) target = $region20
        $region19: #{tpu_custom_call.1} parent=11 // pred_region
          _
        $region20: #{tpu_custom_call.1} parent=11 // pred_fallthru
          _
        // Predicated region
        $region21: #{tpu_custom_call.1} parent=11 // pred_check
          %p391 = pneg %p113
        $region22: #{tpu_custom_call.1} parent=11 // pred_check_branch
          %393 = sbr.rel (%p391) target = $region24
        $region23: #{tpu_custom_call.1} parent=11 // pred_region
          _
        $region24: #{tpu_custom_call.1} parent=11 // pred_fallthru
          _
        // Predicated region
        $region25: #{tpu_custom_call.1} parent=11 // pred_check
          %p394 = pneg %p134
        $region26: #{tpu_custom_call.1} parent=11 // pred_check_branch
          %396 = sbr.rel (%p394) target = $region28
        $region27: #{tpu_custom_call.1} parent=11 // pred_region
          _
        $region28: #{tpu_custom_call.1} parent=11 // pred_fallthru
          _
        // Predicated region
        $region29: #{tpu_custom_call.1} parent=11 // pred_check
          %p397 = pneg %p155
        $region30: #{tpu_custom_call.1} parent=11 // pred_check_branch
          %399 = sbr.rel (%p397) target = $region32
        $region31: #{tpu_custom_call.1} parent=11 // pred_region
          _
        $region32: #{tpu_custom_call.1} parent=11 // pred_fallthru
          _
        // Predicated region
        $region33: #{tpu_custom_call.1} parent=11 // pred_check
          %p400 = pneg %p176
        $region34: #{tpu_custom_call.1} parent=11 // pred_check_branch
          %402 = sbr.rel (%p400) target = $region36
        $region35: #{tpu_custom_call.1} parent=11 // pred_region
          _
        $region36: #{tpu_custom_call.1} parent=11 // pred_fallthru
          _
        // Predicated region
        $region37: #{tpu_custom_call.1} parent=11 // pred_check
          %p403 = pneg %p197
        $region38: #{tpu_custom_call.1} parent=11 // pred_check_branch
          %405 = sbr.rel (%p403) target = $region40
        $region39: #{tpu_custom_call.1} parent=11 // pred_region
          _
        $region40: #{tpu_custom_call.1} parent=11 // pred_fallthru
          _
        // Predicated region
        $region41: #{tpu_custom_call.1} parent=11 // pred_check
          %p406 = pneg %p218
        $region42: #{tpu_custom_call.1} parent=11 // pred_check_branch
          %408 = sbr.rel (%p406) target = $region44
        $region43: #{tpu_custom_call.1} parent=11 // pred_region
          _
        $region44: #{tpu_custom_call.1} parent=11 // pred_fallthru
          _
        // Predicated region
        $region45: #{tpu_custom_call.1} parent=11 // pred_check
          %p409 = pneg %p239
        $region46: #{tpu_custom_call.1} parent=11 // pred_check_branch
          %411 = sbr.rel (%p409) target = $region48
        $region47: #{tpu_custom_call.1} parent=11 // pred_region
          _
        $region48: #{tpu_custom_call.1} parent=11 // pred_fallthru
          _
        // Predicated region
        $region49: #{tpu_custom_call.1} parent=11 // pred_check
          %p412 = pneg %p260
        $region50: #{tpu_custom_call.1} parent=11 // pred_check_branch
          %414 = sbr.rel (%p412) target = $region52
        $region51: #{tpu_custom_call.1} parent=11 // pred_region
          _
        $region52: #{tpu_custom_call.1} parent=11 // pred_fallthru
          _
        // Predicated region
        $region53: #{tpu_custom_call.1} parent=11 // pred_check
          %p415 = pneg %p281
        $region54: #{tpu_custom_call.1} parent=11 // pred_check_branch
          %417 = sbr.rel (%p415) target = $region56
        $region55: #{tpu_custom_call.1} parent=11 // pred_region
          _
        $region56: #{tpu_custom_call.1} parent=11 // pred_fallthru
          _
        // Predicated region
        $region57: #{tpu_custom_call.1} parent=11 // pred_check
          %p418 = pneg %p302
        $region58: #{tpu_custom_call.1} parent=11 // pred_check_branch
          %420 = sbr.rel (%p418) target = $region60
        $region59: #{tpu_custom_call.1} parent=11 // pred_region
          _
        $region60: #{tpu_custom_call.1} parent=11 // pred_fallthru
          _
        // Predicated region
        $region61: #{tpu_custom_call.1} parent=11 // pred_check
          %p421 = pneg %p323
        $region62: #{tpu_custom_call.1} parent=11 // pred_check_branch
          %423 = sbr.rel (%p421) target = $region64
        $region63: #{tpu_custom_call.1} parent=11 // pred_region
          _
        $region64: #{tpu_custom_call.1} parent=11 // pred_fallthru
          _
        // Predicated region
        $region65: #{tpu_custom_call.1} parent=11 // pred_check
          %p424 = pneg %p344
        $region66: #{tpu_custom_call.1} parent=11 // pred_check_branch
          %426 = sbr.rel (%p424) target = $region68
        $region67: #{tpu_custom_call.1} parent=11 // pred_region
          _
        $region68: #{tpu_custom_call.1} parent=11 // pred_fallthru
          _
      $region12: #{tpu_custom_call.1} parent=5 // pred_fallthru
        _
      %p427 = scmp.lt.s32.totalorder %s24, 4
      // Predicated region
      $region69: #{tpu_custom_call.1} parent=5 // pred_check
        %p428 = pneg %p427
      $region70: #{tpu_custom_call.1} parent=5 // pred_check_branch
        %430 = sbr.rel (%p428) target = $region72
      $region71: #{tpu_custom_call.1} parent=5 // pred_region
        // Predicated region
        $region73: #{tpu_custom_call.1} parent=71 // pred_check
          %p431 = pneg %p44
        $region74: #{tpu_custom_call.1} parent=71 // pred_check_branch
          %433 = sbr.rel (%p431) target = $region76
        $region75: #{tpu_custom_call.1} parent=71 // pred_region
          %s434 = smul.u32 2, %s24
          %s435 = ssub.s32 7, %s434
          %p436 = scmp.lt.s32.totalorder %s435, 2
          %s437 = scalar_select %p436, %s435, 2
          %s438 = smul.u32 128, %s437
          %p439 = scmp.lt.s32.totalorder %s434, 6
          %s440 = scalar_select %p439, %s434, 6
          %s441 = smul.addr %s440, 8
          %s442 = scalar_lea.vmem %s0, %s441
          %s443 = smul.u32 2, %s24
          %s444 = ssub.s32 7, %s443
          %p445 = scmp.lt.s32.totalorder %s444, 2
          %s446 = scalar_select %p445, %s444, 2
          %s447 = smul.u32 128, %s446
        $region76: #{tpu_custom_call.1} parent=71 // pred_fallthru
          _
      $region72: #{tpu_custom_call.1} parent=5 // pred_fallthru
        _
      %p448 = scmp.le.s32.totalorder 1, %s24
      %p449 = scmp.lt.s32.totalorder %s24, 5
      %p450 = pnand %p448, %p449
      %p451 = pneg %p450
      // Predicated region
      $region77: #{tpu_custom_call.1} parent=5 // pred_check
        _
      $region78: #{tpu_custom_call.1} parent=5 // pred_check_branch
        %453 = sbr.rel (%p450) target = $region80
      $region79: #{tpu_custom_call.1} parent=5 // pred_region
        %s454 = ssub.s32 %s24, 1
        %s455 = smul.u32 2, %s29
        %s456 = ssub.s32 7, %s455
        %p457 = scmp.lt.s32.totalorder %s456, 2
        %s458 = scalar_select %p457, %s456, 2
        %s459 = smul.u32 128, %s458
        %p460 = scmp.lt.s32.totalorder %s455, 6
        %s461 = scalar_select %p460, %s455, 6
        %s462 = smul.addr %s461, 8
        %s463 = scalar_lea.vmem %s0, %s462
        %p464 = pneg %p50
        %p465 = pneg %p47
        %p466 = pneg %p71
        %p467 = pneg %p68
        %p468 = pneg %p92
        %p469 = pneg %p89
        %p470 = pneg %p113
        %p471 = pneg %p110
        %p472 = pneg %p134
        %p473 = pneg %p131
        %p474 = pneg %p155
        %p475 = pneg %p152
        %p476 = pneg %p176
        %p477 = pneg %p173
        %p478 = pneg %p197
        %p479 = pneg %p194
        %p480 = pneg %p218
        %p481 = pneg %p215
        %p482 = pneg %p239
        %p483 = pneg %p236
        %p484 = pneg %p260
        %p485 = pneg %p257
        %p486 = pneg %p281
        %p487 = pneg %p278
        %p488 = pneg %p302
        %p489 = pneg %p299
        %p490 = pneg %p323
        %p491 = pneg %p320
        %p492 = pneg %p344
        %p493 = pneg %p341
        %p494 = pneg %p370
        %p495 = pneg %p367
        %s496 = sand.u32 %s357, 1
        %s497 = scalar_lea.sflag [#allocation3], %s496
        %s498 = sand.u32 %s357, 1
        %s499 = smul.addr %s498, 8
        %s500 = scalar_lea.vmem [#allocation2], %s499
        %s501 = smul.u32 2, %s29
        %s502 = ssub.s32 7, %s501
        %p503 = scmp.lt.s32.totalorder %s502, 2
        %s504 = scalar_select %p503, %s502, 2
        %s505 = smul.u32 128, %s504
        %p506 = scmp.lt.s32.totalorder %s501, 6
        %s507 = scalar_select %p506, %s501, 6
        %s508 = smul.addr %s507, 8
        %s509 = scalar_lea.vmem %s0, %s508
        %s510 = smul.u32 2, %s29
        %s511 = ssub.s32 7, %s510
        %p512 = scmp.lt.s32.totalorder %s511, 2
        %s513 = scalar_select %p512, %s511, 2
        %s514 = smul.u32 128, %s513
        %s515 = smul.u32 2, %s29
        %s516 = ssub.s32 7, %s515
        %p517 = scmp.lt.s32.totalorder %s516, 2
        %s518 = scalar_select %p517, %s516, 2
        %s519 = smul.u32 64, %s518
        %v521 = vld [vmem:[%s509] sm:$0xff]
        %v522 = vld [vmem:[%s509 + $0x8] sm:$0xff]
        %v523 = vpack.c.bf16 %v522, %v521
        %v524 = vld [vmem:[%s1] sm:$0xf]
        %v525 = vld [vmem:[%s1 + $0x4] sm:$0xf]
        %v526 = vld [vmem:[%s2] sm:$0x1]
        %v528 = vlaneseq
        %v529 = vshrl.u32 %v528, 7
        %v530 = vsub.s32 0, %v529
        %v531 = vrot.slane %v526, %v530
        %v535 = vunpack.c.l.b16 %v524
        %v536 = vunpack.c.l.b16 %v525
        %v537 = vpack.c.b16 %v536, %v535
        %vm539 = vcmask 130048
        %v541 = vsel %vm539, %v523, 0
        %543 = vmatprep.subr.bf16.mxu0 0
        %544 = vmatpush1.bf16.msra.mxu0 %v537
        %545 = vmatprep.subr.bf16.mxu0 0
        %546 = vmatpush1.bf16.msra.mxu0 0
        %547 = vmatprep.subr.bf16.mxu0 0
        %548 = vmatpush1.bf16.msra.mxu0 0
        %549 = vmatprep.subr.bf16.mxu0 0
        %550 = vmatpush1.bf16.msra.mxu0 0
        %551 = vmatprep.subr.bf16.mxu0 0
        %552 = vmatpush1.bf16.msra.mxu0 0
        %553 = vmatprep.subr.bf16.mxu0 0
        %554 = vmatpush1.bf16.msra.mxu0 0
        %555 = vmatprep.subr.bf16.mxu0 0
        %556 = vmatpush1.bf16.msra.mxu0 0
        %557 = vmatprep.subr.bf16.mxu0 0
        %558 = vmatpush1.bf16.msra.mxu0 0
        %559 = vmatprep.subr.bf16.mxu0 0
        %560 = vmatpush1.bf16.msra.mxu0 0
        %561 = vmatprep.subr.bf16.mxu0 0
        %562 = vmatpush1.bf16.msra.mxu0 0
        %563 = vmatprep.subr.bf16.mxu0 0
        %564 = vmatpush1.bf16.msra.mxu0 0
        %565 = vmatprep.subr.bf16.mxu0 0
        %566 = vmatpush1.bf16.msra.mxu0 0
        %567 = vmatprep.subr.bf16.mxu0 0
        %568 = vmatpush1.bf16.msra.mxu0 0
        %569 = vmatprep.subr.bf16.mxu0 0
        %570 = vmatpush1.bf16.msra.mxu0 0
        %571 = vmatprep.subr.bf16.mxu0 0
        %572 = vmatpush1.bf16.msra.mxu0 0
        %573 = vmatprep.subr.bf16.mxu0 0
        %574 = vmatpush1.bf16.msra.mxu0 0
        %575 = vmatprep.mubr.bf16.mxu0 0
        %576 = vmatmul.mubr.bf16.gmra.mrb[0].mxu0 %v541
        %v577 = vpop.f32.mrb[0].mxu0
        %v578 = vadd.f32 %v531, %v577
        %v579 = vpop.f32.mrb[0].mxu0
        %v580 = vpop.f32.mrb[0].mxu0
        %v581 = vadd.f32 %v531, %v580
        %v582 = vpop.f32.mrb[0].mxu0
        %583 = vdwg.mxu0
        %v584 = vld [vmem:[%s3] sm:$0x1]
        %v585 = vld [vmem:[%s4] sm:$0x1]
        %vm586 = vcmask 261120
        %v587 = vsel %vm586, %v578, 0.0
        %588 = vadd.xlane.f32.xlu0 %v587
        %v589 = vpop.xlane.xlu0 %588
        %v590 = vsel %vm586, %v581, 0.0
        %591 = vadd.xlane.f32.xlu0 %v590
        %v592 = vpop.xlane.xlu0 %591
        %v593 = vrcp.pop 32.0
        %v594 = vmul.f32 %v589, %v593
        %v595 = vmul.f32 %v592, %v593
        %v596 = vsub.f32 %v578, %v594
        %v597 = vsub.f32 %v581, %v595
        %v598 = vmul.f32 %v596, %v596
        %v599 = vmul.f32 %v597, %v597
        %v600 = vsel %vm586, %v598, 0.0
        %601 = vadd.xlane.f32.xlu0 %v600
        %v602 = vpop.xlane.xlu0 %601
        %v603 = vsel %vm586, %v599, 0.0
        %604 = vadd.xlane.f32.xlu0 %v603
        %v605 = vpop.xlane.xlu0 %604
        %v606 = vmul.f32 %v602, %v593
        %v607 = vmul.f32 %v605, %v593
        %v608 = vadd.f32 %v606, 1e-05
        %v609 = vadd.f32 %v607, 1e-05
        %v610 = vrsqrt.pop %v608
        %v611 = vrsqrt.pop %v609
        %v613 = vlaneseq
        %v614 = vshrl.u32 %v613, 7
        %v615 = vsub.s32 0, %v614
        %v616 = vrot.slane %v584, %v615
        %v618 = vmul.f32 %v610, %v616
        %v619 = vmul.f32 %v611, %v616
        %v620 = vmul.f32 %v596, %v618
        %v621 = vmul.f32 %v597, %v619
        %v623 = vlaneseq
        %v624 = vshrl.u32 %v623, 7
        %v625 = vsub.s32 0, %v624
        %v626 = vrot.slane %v585, %v625
        %v628 = vadd.f32 %v620, %v626
        %v629 = vadd.f32 %v621, %v626
        loop: start=0, step=1, limit=3
        $region81: #{tpu_custom_call.1} parent=79 // loop_pre_header
          _
        $region82: #{tpu_custom_call.1} parent=79 // loop_header
          %s631 = sphi 0, %s635
          %p632 = scmp.ge.s32.totalorder %s631, 3
          %v636 = vphi %v628, %v847
          %v637 = vphi %v629, %v848
        $region83: #{tpu_custom_call.1} parent=79 // loop_header_branch
          %634 = sbr.rel (%p632) target = $region87
        $region84: #{tpu_custom_call.1} parent=79 // loop_body
          %s638 = scalar_lea.vmem %s5, %s631
          %v639 = vld [vmem:[%s638] sm:$0x1]
          %s640 = scalar_lea.vmem %s6, %s631
          %v641 = vld [vmem:[%s640] sm:$0x1]
          %v642 = vsel %vm586, %v636, 0.0
          %643 = vadd.xlane.f32.xlu0 %v642
          %v644 = vpop.xlane.xlu0 %643
          %v645 = vsel %vm586, %v637, 0.0
          %646 = vadd.xlane.f32.xlu0 %v645
          %v647 = vpop.xlane.xlu0 %646
          %v648 = vmul.f32 %v644, %v593
          %v649 = vmul.f32 %v647, %v593
          %v650 = vsub.f32 %v636, %v648
          %v651 = vsub.f32 %v637, %v649
          %v652 = vmul.f32 %v650, %v650
          %v653 = vmul.f32 %v651, %v651
          %v654 = vsel %vm586, %v652, 0.0
          %655 = vadd.xlane.f32.xlu0 %v654
          %v656 = vpop.xlane.xlu0 %655
          %v657 = vsel %vm586, %v653, 0.0
          %658 = vadd.xlane.f32.xlu0 %v657
          %v659 = vpop.xlane.xlu0 %658
          %v660 = vmul.f32 %v656, %v593
          %v661 = vmul.f32 %v659, %v593
          %v662 = vadd.f32 %v660, 1e-05
          %v663 = vadd.f32 %v661, 1e-05
          %v664 = vrsqrt.pop %v662
          %v665 = vrsqrt.pop %v663
          %v666 = vlaneseq
          %v667 = vshrl.u32 %v666, 7
          %v668 = vsub.s32 0, %v667
          %v669 = vrot.slane %v639, %v668
          %v670 = vmul.f32 %v664, %v669
          %v671 = vmul.f32 %v665, %v669
          %v672 = vmul.f32 %v650, %v670
          %v673 = vmul.f32 %v651, %v671
          %v674 = vlaneseq
          %v675 = vshrl.u32 %v674, 7
          %v676 = vsub.s32 0, %v675
          %v677 = vrot.slane %v641, %v676
          %v678 = vadd.f32 %v672, %v677
          %v679 = vadd.f32 %v673, %v677
          %v680 = vpack.c.bf16 %v679, %v678
          %s681 = smul.u32 %s631, 4
          %s682 = smul.addr %s681, 4
          %s683 = scalar_lea.vmem %s7, %s682
          %v684 = vld [vmem:[%s683] sm:$0xf]
          %v685 = vld [vmem:[%s683 + $0x4] sm:$0xf]
          %v686 = vld [vmem:[%s683 + $0x8] sm:$0xf]
          %v687 = vld [vmem:[%s683 + $0xc] sm:$0xf]
          %s688 = scalar_lea.vmem %s8, %s631
          %v689 = vld [vmem:[%s688] sm:$0x1]
          %v690 = vlaneseq
          %v691 = vshrl.u32 %v690, 7
          %v692 = vsub.s32 0, %v691
          %v693 = vrot.slane %v689, %v692
          %v698 = vunpack.c.l.b16 %v684
          %v699 = vunpack.c.l.b16 %v685
          %v700 = vunpack.c.l.b16 %v686
          %v701 = vunpack.c.l.b16 %v687
          %v702 = vpack.c.b16 %v699, %v698
          %v703 = vpack.c.b16 %v701, %v700
          %v707 = vsel %vm586, %v680, 0
          %709 = vmatprep.subr.bf16.mxu0 0
          %710 = vmatpush1.bf16.msra.mxu0 %v702
          %711 = vmatprep.subr.bf16.mxu0 0
          %712 = vmatpush1.bf16.msra.mxu0 %v703
          %713 = vmatprep.subr.bf16.mxu0 0
          %714 = vmatpush1.bf16.msra.mxu0 0
          %715 = vmatprep.subr.bf16.mxu0 0
          %716 = vmatpush1.bf16.msra.mxu0 0
          %717 = vmatprep.subr.bf16.mxu0 0
          %718 = vmatpush1.bf16.msra.mxu0 0
          %719 = vmatprep.subr.bf16.mxu0 0
          %720 = vmatpush1.bf16.msra.mxu0 0
          %721 = vmatprep.subr.bf16.mxu0 0
          %722 = vmatpush1.bf16.msra.mxu0 0
          %723 = vmatprep.subr.bf16.mxu0 0
          %724 = vmatpush1.bf16.msra.mxu0 0
          %725 = vmatprep.subr.bf16.mxu0 0
          %726 = vmatpush1.bf16.msra.mxu0 0
          %727 = vmatprep.subr.bf16.mxu0 0
          %728 = vmatpush1.bf16.msra.mxu0 0
          %729 = vmatprep.subr.bf16.mxu0 0
          %730 = vmatpush1.bf16.msra.mxu0 0
          %731 = vmatprep.subr.bf16.mxu0 0
          %732 = vmatpush1.bf16.msra.mxu0 0
          %733 = vmatprep.subr.bf16.mxu0 0
          %734 = vmatpush1.bf16.msra.mxu0 0
          %735 = vmatprep.subr.bf16.mxu0 0
          %736 = vmatpush1.bf16.msra.mxu0 0
          %737 = vmatprep.subr.bf16.mxu0 0
          %738 = vmatpush1.bf16.msra.mxu0 0
          %739 = vmatprep.subr.bf16.mxu0 0
          %740 = vmatpush1.bf16.msra.mxu0 0
          %741 = vmatprep.mubr.bf16.mxu0 0
          %742 = vmatmul.mubr.bf16.gmra.mrb[0].mxu0 %v707
          %v743 = vpop.f32.mrb[0].mxu0
          %v744 = vadd.f32 %v693, %v743
          %v745 = vpop.f32.mrb[0].mxu0
          %v746 = vpop.f32.mrb[0].mxu0
          %v747 = vadd.f32 %v693, %v746
          %v748 = vpop.f32.mrb[0].mxu0
          %749 = vdwg.mxu0
          %v750 = vmul.f32 %v744, 0.5
          %v751 = vmul.f32 %v747, 0.5
          %v752 = vmul.f32 %v744, 0.70710677
          %v753 = vmul.f32 %v747, 0.70710677
          %v754 = verf.f32.pop %v752
          %v755 = verf.f32.pop %v753
          %v756 = vadd.f32 %v754, 1.0
          %v757 = vadd.f32 %v755, 1.0
          %v758 = vmul.f32 %v750, %v756
          %v759 = vmul.f32 %v751, %v757
          %v760 = vpack.c.bf16 %v759, %v758
          %s761 = smul.u32 %s631, 8
          %s762 = smul.addr %s761, 4
          %s763 = scalar_lea.vmem %s9, %s762
          %v764 = vld [vmem:[%s763] sm:$0xf]
          %v765 = vld [vmem:[%s763 + $0x4] sm:$0xf]
          %v766 = vld [vmem:[%s763 + $0x8] sm:$0xf]
          %v767 = vld [vmem:[%s763 + $0xc] sm:$0xf]
          %v768 = vld [vmem:[%s763 + $0x10] sm:$0xf]
          %v769 = vld [vmem:[%s763 + $0x14] sm:$0xf]
          %v770 = vld [vmem:[%s763 + $0x18] sm:$0xf]
          %v771 = vld [vmem:[%s763 + $0x1c] sm:$0xf]
          %s772 = scalar_lea.vmem %s10, %s631
          %v773 = vld [vmem:[%s772] sm:$0x1]
          %v774 = vlaneseq
          %v775 = vshrl.u32 %v774, 7
          %v776 = vsub.s32 0, %v775
          %v777 = vrot.slane %v773, %v776
          %v786 = vunpack.c.l.b16 %v764
          %v787 = vunpack.c.l.b16 %v765
          %v788 = vunpack.c.l.b16 %v766
          %v789 = vunpack.c.l.b16 %v767
          %v790 = vunpack.c.l.b16 %v768
          %v791 = vunpack.c.l.b16 %v769
          %v792 = vunpack.c.l.b16 %v770
          %v793 = vunpack.c.l.b16 %v771
          %v794 = vpack.c.b16 %v787, %v786
          %v795 = vpack.c.b16 %v789, %v788
          %v796 = vpack.c.b16 %v791, %v790
          %v797 = vpack.c.b16 %v793, %v792
          %vm802 = vcmask 523264
          %v804 = vsel %vm802, %v760, 0
          %806 = vmatprep.subr.bf16.mxu0 0
          %807 = vmatpush1.bf16.msra.mxu0 %v794
          %808 = vmatprep.subr.bf16.mxu0 0
          %809 = vmatpush1.bf16.msra.mxu0 %v795
          %810 = vmatprep.subr.bf16.mxu0 0
          %811 = vmatpush1.bf16.msra.mxu0 %v796
          %812 = vmatprep.subr.bf16.mxu0 0
          %813 = vmatpush1.bf16.msra.mxu0 %v797
          %814 = vmatprep.subr.bf16.mxu0 0
          %815 = vmatpush1.bf16.msra.mxu0 0
          %816 = vmatprep.subr.bf16.mxu0 0
          %817 = vmatpush1.bf16.msra.mxu0 0
          %818 = vmatprep.subr.bf16.mxu0 0
          %819 = vmatpush1.bf16.msra.mxu0 0
          %820 = vmatprep.subr.bf16.mxu0 0
          %821 = vmatpush1.bf16.msra.mxu0 0
          %822 = vmatprep.subr.bf16.mxu0 0
          %823 = vmatpush1.bf16.msra.mxu0 0
          %824 = vmatprep.subr.bf16.mxu0 0
          %825 = vmatpush1.bf16.msra.mxu0 0
          %826 = vmatprep.subr.bf16.mxu0 0
          %827 = vmatpush1.bf16.msra.mxu0 0
          %828 = vmatprep.subr.bf16.mxu0 0
          %829 = vmatpush1.bf16.msra.mxu0 0
          %830 = vmatprep.subr.bf16.mxu0 0
          %831 = vmatpush1.bf16.msra.mxu0 0
          %832 = vmatprep.subr.bf16.mxu0 0
          %833 = vmatpush1.bf16.msra.mxu0 0
          %834 = vmatprep.subr.bf16.mxu0 0
          %835 = vmatpush1.bf16.msra.mxu0 0
          %836 = vmatprep.subr.bf16.mxu0 0
          %837 = vmatpush1.bf16.msra.mxu0 0
          %838 = vmatprep.mubr.bf16.mxu0 0
          %839 = vmatmul.mubr.bf16.gmra.mrb[0].mxu0 %v804
          %v840 = vpop.f32.mrb[0].mxu0
          %v841 = vadd.f32 %v777, %v840
          %v842 = vpop.f32.mrb[0].mxu0
          %v843 = vpop.f32.mrb[0].mxu0
          %v844 = vadd.f32 %v777, %v843
          %v845 = vpop.f32.mrb[0].mxu0
          %846 = vdwg.mxu0
          %v847 = vadd.f32 %v636, %v841
          %v848 = vadd.f32 %v637, %v844
        $region85: #{tpu_custom_call.1} parent=79 // loop_footer
          %s635 = sadd.s32 1, %s631
        $region86: #{tpu_custom_call.1} parent=79 // loop_footer_branch
          %630 = sbr.rel target = $region82
        $region87: #{tpu_custom_call.1} parent=79 // loop_exit
          _
        %v849 = vld [vmem:[%s11] sm:$0x1]
        %v850 = vld [vmem:[%s12] sm:$0x1]
        %v851 = vsel %vm586, %v636, 0.0
        %852 = vadd.xlane.f32.xlu0 %v851
        %v853 = vpop.xlane.xlu0 %852
        %v854 = vsel %vm586, %v637, 0.0
        %855 = vadd.xlane.f32.xlu0 %v854
        %v856 = vpop.xlane.xlu0 %855
        %v857 = vmul.f32 %v853, %v593
        %v858 = vmul.f32 %v856, %v593
        %v859 = vsub.f32 %v636, %v857
        %v860 = vsub.f32 %v637, %v858
        %v861 = vmul.f32 %v859, %v859
        %v862 = vmul.f32 %v860, %v860
        %v863 = vsel %vm586, %v861, 0.0
        %864 = vadd.xlane.f32.xlu0 %v863
        %v865 = vpop.xlane.xlu0 %864
        %v866 = vsel %vm586, %v862, 0.0
        %867 = vadd.xlane.f32.xlu0 %v866
        %v868 = vpop.xlane.xlu0 %867
        %v869 = vmul.f32 %v865, %v593
        %v870 = vmul.f32 %v868, %v593
        %v871 = vadd.f32 %v869, 1e-05
        %v872 = vadd.f32 %v870, 1e-05
        %v873 = vrsqrt.pop %v871
        %v874 = vrsqrt.pop %v872
        %v876 = vlaneseq
        %v877 = vshrl.u32 %v876, 7
        %v878 = vsub.s32 0, %v877
        %v879 = vrot.slane %v849, %v878
        %v881 = vmul.f32 %v873, %v879
        %v882 = vmul.f32 %v874, %v879
        %v883 = vmul.f32 %v859, %v881
        %v884 = vmul.f32 %v860, %v882
        %v886 = vlaneseq
        %v887 = vshrl.u32 %v886, 7
        %v888 = vsub.s32 0, %v887
        %v889 = vrot.slane %v850, %v888
        %v891 = vadd.f32 %v883, %v889
        %v892 = vadd.f32 %v884, %v889
        %v893 = vpack.c.bf16 %v892, %v891
        %v894 = vld [vmem:[%s13] sm:$0xf]
        %v895 = vld [vmem:[%s13 + $0x4] sm:$0xf]
        %v896 = vld [vmem:[%s13 + $0x8] sm:$0xf]
        %v897 = vld [vmem:[%s13 + $0xc] sm:$0xf]
        %v898 = vld [vmem:[%s14] sm:$0x1]
        %v900 = vlaneseq
        %v901 = vshrl.u32 %v900, 7
        %v902 = vsub.s32 0, %v901
        %v903 = vrot.slane %v898, %v902
        %v909 = vunpack.c.l.b16 %v894
        %v910 = vunpack.c.l.b16 %v895
        %v911 = vunpack.c.l.b16 %v896
        %v912 = vunpack.c.l.b16 %v897
        %v913 = vpack.c.b16 %v910, %v909
        %v914 = vpack.c.b16 %v912, %v911
        %v918 = vsel %vm586, %v893, 0
        %920 = vmatprep.subr.bf16.mxu0 0
        %921 = vmatpush1.bf16.msra.mxu0 %v913
        %922 = vmatprep.subr.bf16.mxu0 0
        %923 = vmatpush1.bf16.msra.mxu0 %v914
        %924 = vmatprep.subr.bf16.mxu0 0
        %925 = vmatpush1.bf16.msra.mxu0 0
        %926 = vmatprep.subr.bf16.mxu0 0
        %927 = vmatpush1.bf16.msra.mxu0 0
        %928 = vmatprep.subr.bf16.mxu0 0
        %929 = vmatpush1.bf16.msra.mxu0 0
        %930 = vmatprep.subr.bf16.mxu0 0
        %931 = vmatpush1.bf16.msra.mxu0 0
        %932 = vmatprep.subr.bf16.mxu0 0
        %933 = vmatpush1.bf16.msra.mxu0 0
        %934 = vmatprep.subr.bf16.mxu0 0
        %935 = vmatpush1.bf16.msra.mxu0 0
        %936 = vmatprep.subr.bf16.mxu0 0
        %937 = vmatpush1.bf16.msra.mxu0 0
        %938 = vmatprep.subr.bf16.mxu0 0
        %939 = vmatpush1.bf16.msra.mxu0 0
        %940 = vmatprep.subr.bf16.mxu0 0
        %941 = vmatpush1.bf16.msra.mxu0 0
        %942 = vmatprep.subr.bf16.mxu0 0
        %943 = vmatpush1.bf16.msra.mxu0 0
        %944 = vmatprep.subr.bf16.mxu0 0
        %945 = vmatpush1.bf16.msra.mxu0 0
        %946 = vmatprep.subr.bf16.mxu0 0
        %947 = vmatpush1.bf16.msra.mxu0 0
        %948 = vmatprep.subr.bf16.mxu0 0
        %949 = vmatpush1.bf16.msra.mxu0 0
        %950 = vmatprep.subr.bf16.mxu0 0
        %951 = vmatpush1.bf16.msra.mxu0 0
        %952 = vmatprep.mubr.bf16.mxu0 0
        %953 = vmatmul.mubr.bf16.gmra.mrb[0].mxu0 %v918
        %v954 = vpop.f32.mrb[0].mxu0
        %v955 = vadd.f32 %v903, %v954
        %v956 = vpop.f32.mrb[0].mxu0
        %v957 = vpop.f32.mrb[0].mxu0
        %v958 = vadd.f32 %v903, %v957
        %v959 = vpop.f32.mrb[0].mxu0
        %960 = vdwg.mxu0
        %v961 = vpack.c.bf16 %v958, %v955
        %v963 = vunpack.c.l.b16 %v961
        %v964 = vunpack.c.h.b16 %v961
        %v965 = vpack.c.b16 %v963, %v963
        %v966 = vpack.c.b16 %v964, %v964
        %969 = vst [vmem:[%s500] sm:$0xf] %v965
        %970 = vst [vmem:[%s500 + $0x4] sm:$0xf] %v966
        %s971 = sand.u32 %s357, 1
        %s972 = scalar_lea.sflag [#allocation3], %s971
        %s973 = sand.u32 %s357, 1
        %s974 = smul.addr %s973, 8
        %s975 = scalar_lea.vmem [#allocation2], %s974
        // Predicated region
        $region88: #{tpu_custom_call.1} parent=79 // pred_check
          %p976 = pneg %p367
        $region89: #{tpu_custom_call.1} parent=79 // pred_check_branch
          %978 = sbr.rel (%p976) target = $region91
        $region90: #{tpu_custom_call.1} parent=79 // pred_region
          %s979 = smul.u32 2, %s29
          %s980 = ssub.s32 7, %s979
          %p981 = scmp.lt.s32.totalorder %s980, 2
          %s982 = scalar_select %p981, %s980, 2
          %s983 = smul.u32 64, %s982
          %s985 = ssub.s32 128, %s983
          %986 = vsyncadd %s972, %s985
          %p987 = scmp.ne.s32.totalorder 0, %s983
          %s988 = smul.addr %s979, 64
          %s989 = scalar_lea.hbm %s15, %s988
          %s990 = smul.u32 4, %s982
          %s991 = sshll.u32 %s975, 4
          %s992 = int_to_ptr.vmem [resolvable:$true] %s991
          %s993 = sshll.u32 %s990, 4
          %997 = dma.vmem_to_hbm [thread:$0]  (%p987), %s992, %s993, %s989, %s972, 64, 64, 4
        $region91: #{tpu_custom_call.1} parent=79 // pred_fallthru
          _
      $region80: #{tpu_custom_call.1} parent=5 // pred_fallthru
        _
      %p998 = scmp.le.s32.totalorder 2, %s24
      // Predicated region
      $region92: #{tpu_custom_call.1} parent=5 // pred_check
        %p999 = pneg %p998
      $region93: #{tpu_custom_call.1} parent=5 // pred_check_branch
        %1001 = sbr.rel (%p999) target = $region95
      $region94: #{tpu_custom_call.1} parent=5 // pred_region
        %s1002 = ssub.s32 %s24, 2
        // Predicated region
        $region96: #{tpu_custom_call.1} parent=94 // pred_check
          %p1003 = pneg %p373
        $region97: #{tpu_custom_call.1} parent=94 // pred_check_branch
          %1005 = sbr.rel (%p1003) target = $region99
        $region98: #{tpu_custom_call.1} parent=94 // pred_region
          %s1006 = sand.u32 %s358, 1
          %s1007 = scalar_lea.sflag [#allocation3], %s1006
          %s1008 = sand.u32 %s358, 1
          %s1009 = smul.addr %s1008, 8
          %s1010 = scalar_lea.vmem [#allocation2], %s1009
          %1011 = dma.done %s1007, 128
        $region99: #{tpu_custom_call.1} parent=94 // pred_fallthru
          _
      $region95: #{tpu_custom_call.1} parent=5 // pred_fallthru
        _
    $region6: #{tpu_custom_call.1} parent=1 // loop_footer
      %s28 = sadd.s32 1, %s24
    $region7: #{tpu_custom_call.1} parent=1 // loop_footer_branch
      %23 = sbr.rel target = $region3
    $region8: #{tpu_custom_call.1} parent=1 // loop_exit
      _
    %1012 = vsyncpa [#allocation3], 1
    %s1013 = scalar_lea.sflag [#allocation3], 1
    %1014 = vsyncpa %s1013, 1

</llo_original>
